<compile_context>
chip_gen: v7x
topology: tpu7x:2x2x1
jax: 0.10.0
libtpu: 0.0.40
codegen_flags: <defaults>
</compile_context>

<pallas_src>
import jax
import jax.numpy as jnp
from jax.experimental import pallas as pl
from jax.experimental.pallas import tpu as pltpu


def mlp_kernel(x_ref, w1_ref, b1_ref, w2_ref, b2_ref, o_ref):
    # Hoist bias reads (single broadcast each; no per-iteration rebroadcast).
    b1 = b1_ref[...]                                   # (1, hidden)
    b2 = b2_ref[...]                                   # (1, out_size)
    # hidden = relu(x @ W1 + b1)
    h = jnp.dot(x_ref[...], w1_ref[...], preferred_element_type=jnp.float32)
    h = jnp.maximum(h + b1, 0.0)
    # y = hidden @ W2 + b2
    y = jnp.dot(h, w2_ref[...], preferred_element_type=jnp.float32)
    o_ref[...] = (y + b2).astype(o_ref.dtype)


def _round_up(x, m):
    return ((x + m - 1) // m) * m


def neuralnet_forward(x, w1, b1, w2, b2, *, tile_n=4096):
    """x: (N, in_size) f32 -> (N, out_size) f32 == relu(x@W1+b1)@W2+b2."""
    n, in_size = x.shape
    hidden = w1.shape[1]
    out_size = w2.shape[1]

    # Row tile selection:
    #  (a) big default tile (4096) to amortize per-grid-step overhead,
    #  (b) at least 2 grid steps when N allows (v7x has 2 TensorCores),
    #  (c) keep double-buffered x+out blocks under ~12 MiB of VMEM.
    bytes_per_row = 4 * (in_size + out_size)
    vmem_row_cap = max(8, (12 * 1024 * 1024) // (2 * bytes_per_row))
    half_n = _round_up(max(pl.cdiv(n, 2), 1), 8)
    tile_rows = max(8, (min(tile_n, half_n, vmem_row_cap) // 8) * 8)

    grid = (pl.cdiv(n, tile_rows),)

    # Advisory cost estimate matching the bytes actually DMA'd (no padding).
    flops = 2 * n * (in_size * hidden + hidden * out_size)
    bytes_accessed = 4 * (n * in_size + n * out_size
                          + in_size * hidden + hidden
                          + hidden * out_size + out_size)

    return pl.pallas_call(
        mlp_kernel,
        out_shape=jax.ShapeDtypeStruct((n, out_size), jnp.float32),
        grid_spec=pl.GridSpec(
            grid=grid,
            in_specs=[
                # x: tiled over rows; last dim == full array dim (no lane pad).
                pl.BlockSpec((tile_rows, in_size), lambda i: (i, 0)),
                # W1/b1/W2/b2: constant index maps -> resident in VMEM.
                pl.BlockSpec((in_size, hidden), lambda i: (0, 0)),
                pl.BlockSpec((1, hidden), lambda i: (0, 0)),
                pl.BlockSpec((hidden, out_size), lambda i: (0, 0)),
                pl.BlockSpec((1, out_size), lambda i: (0, 0)),
            ],
            out_specs=pl.BlockSpec((tile_rows, out_size), lambda i: (i, 0)),
        ),
        compiler_params=pltpu.CompilerParams(
            # Batch-tile axis is independent -> shard across TCs on v7x.
            dimension_semantics=("parallel",),
            # Safe on v5e/v6e/v7x; footprint stays far below this by design.
            vmem_limit_bytes=32 * 1024 * 1024,
        ),
        cost_estimate=pl.CostEstimate(
            flops=flops, transcendentals=0, bytes_accessed=bytes_accessed),
    )(x, w1, b1, w2, b2)


def init_params(key, in_size, hidden, out_size):
    """Deterministic init mimicking torch.nn.Linear (uniform +-1/sqrt(fan_in))."""
    k1, k2, k3, k4 = jax.random.split(key, 4)
    bound1 = 1.0 / jnp.sqrt(in_size)
    bound2 = 1.0 / jnp.sqrt(hidden)
    w1 = jax.random.uniform(k1, (in_size, hidden), jnp.float32, -bound1, bound1)
    b1 = jax.random.uniform(k2, (1, hidden), jnp.float32, -bound1, bound1)
    w2 = jax.random.uniform(k3, (hidden, out_size), jnp.float32, -bound2, bound2)
    b2 = jax.random.uniform(k4, (1, out_size), jnp.float32, -bound2, bound2)
    return w1, b1, w2, b2


if __name__ == "__main__":
    # TODO(synk): optimizer / step() (SGD + loss backward) is training logic
    # with no forward-pass Pallas equivalent here.
    N, IN_SIZE, HIDDEN, OUT_SIZE = 8, 16, 32, 4

    key = jax.random.PRNGKey(0)
    k_x, k_p = jax.random.split(key)
    x = jax.random.normal(k_x, (N, IN_SIZE), jnp.float32)
    w1, b1, w2, b2 = init_params(k_p, IN_SIZE, HIDDEN, OUT_SIZE)

    y = neuralnet_forward(x, w1, b1, w2, b2)
    jax.block_until_ready(y)

    # Reference check in plain JAX
    h_ref = jnp.maximum(x @ w1 + b1, 0.0)
    y_ref = h_ref @ w2 + b2
    assert y.shape == (N, OUT_SIZE)
    assert jnp.allclose(y, y_ref, atol=1e-5, rtol=1e-5)

    print("KERNEL_OK")
</pallas_src>

<mosaic_0001>
module attributes {stable_mosaic.version = 11 : i64} {
  func.func @mlp_kernel(%arg0: i32, %arg1: memref<8x16xf32, #tpu.memory_space<vmem>>, %arg2: memref<16x32xf32, #tpu.memory_space<vmem>>, %arg3: memref<1x32xf32, #tpu.memory_space<vmem>>, %arg4: memref<32x4xf32, #tpu.memory_space<vmem>>, %arg5: memref<1x4xf32, #tpu.memory_space<vmem>>, %arg6: memref<8x4xf32, #tpu.memory_space<vmem>>) attributes {dimension_semantics = [#tpu.dimension_semantics<parallel>], iteration_bounds = array<i64: 1>, scalar_prefetch = 0 : i64, scratch_operands = 0 : i64, tpu.core_type = #tpu.core_type<tc>, window_params = [{transform_indices = @transform_0, window_bounds = array<i64: 8, 16>}, {pipeline_mode = #tpu.pipeline_mode<synchronous>, transform_indices = @transform_1, window_bounds = array<i64: 16, 32>}, {pipeline_mode = #tpu.pipeline_mode<synchronous>, transform_indices = @transform_2, window_bounds = array<i64: 1, 32>}, {pipeline_mode = #tpu.pipeline_mode<synchronous>, transform_indices = @transform_3, window_bounds = array<i64: 32, 4>}, {pipeline_mode = #tpu.pipeline_mode<synchronous>, transform_indices = @transform_4, window_bounds = array<i64: 1, 4>}, {transform_indices = @transform_5, window_bounds = array<i64: 8, 4>}]} {
    %c0 = arith.constant 0 : index
    %c0_0 = arith.constant 0 : index
    %0 = vector.load %arg3[%c0, %c0_0] : memref<1x32xf32, #tpu.memory_space<vmem>>, vector<1x32xf32>
    %c0_1 = arith.constant 0 : index
    %c0_2 = arith.constant 0 : index
    %1 = vector.load %arg5[%c0_1, %c0_2] : memref<1x4xf32, #tpu.memory_space<vmem>>, vector<1x4xf32>
    %c0_3 = arith.constant 0 : index
    %c0_4 = arith.constant 0 : index
    %2 = vector.load %arg1[%c0_3, %c0_4] : memref<8x16xf32, #tpu.memory_space<vmem>>, vector<8x16xf32>
    %c0_5 = arith.constant 0 : index
    %c0_6 = arith.constant 0 : index
    %3 = vector.load %arg2[%c0_5, %c0_6] : memref<16x32xf32, #tpu.memory_space<vmem>>, vector<16x32xf32>
    %cst = arith.constant dense<0.000000e+00> : vector<8x32xf32>
    %4 = tpu.matmul %2, %3, %cst {dimension_numbers = #tpu.dot_dimension_numbers<[1], [0], [0], [1], [0, 0, 1, 1], [], []>} : vector<8x16xf32>, vector<16x32xf32>, vector<8x32xf32> -> vector<8x32xf32>
    %5 = vector.broadcast %0 : vector<1x32xf32> to vector<8x32xf32>
    %6 = arith.addf %4, %5 : vector<8x32xf32>
    %cst_7 = arith.constant 0.000000e+00 : f32
    %7 = vector.broadcast %cst_7 : f32 to vector<8x32xf32>
    %8 = arith.maximumf %6, %7 : vector<8x32xf32>
    %c0_8 = arith.constant 0 : index
    %c0_9 = arith.constant 0 : index
    %9 = vector.load %arg4[%c0_8, %c0_9] : memref<32x4xf32, #tpu.memory_space<vmem>>, vector<32x4xf32>
    %cst_10 = arith.constant dense<0.000000e+00> : vector<8x4xf32>
    %10 = tpu.matmul %8, %9, %cst_10 {dimension_numbers = #tpu.dot_dimension_numbers<[1], [0], [0], [1], [0, 0, 1, 1], [], []>} : vector<8x32xf32>, vector<32x4xf32>, vector<8x4xf32> -> vector<8x4xf32>
    %11 = vector.broadcast %1 : vector<1x4xf32> to vector<8x4xf32>
    %12 = arith.addf %10, %11 : vector<8x4xf32>
    %c0_11 = arith.constant 0 : index
    %c0_12 = arith.constant 0 : index
    %13 = vector.load %arg6[%c0_11, %c0_12] : memref<8x4xf32, #tpu.memory_space<vmem>>, vector<8x4xf32>
    tpu.vector_store %arg6[%c0_11, %c0_12], %12 {strides = array<i32>} : memref<8x4xf32, #tpu.memory_space<vmem>>, vector<8x4xf32>,
    return
  }
  func.func @transform_0(%arg0: i32) -> (i32, i32) {
    %c0_i32 = arith.constant 0 : i32
    %c0_i32_0 = arith.constant 0 : i32
    return %arg0, %c0_i32 : i32, i32
  }
  func.func @transform_1(%arg0: i32) -> (i32, i32) {
    %c0_i32 = arith.constant 0 : i32
    %c0_i32_0 = arith.constant 0 : i32
    %c0_i32_1 = arith.constant 0 : i32
    return %c0_i32, %c0_i32_0 : i32, i32
  }
  func.func @transform_2(%arg0: i32) -> (i32, i32) {
    %c0_i32 = arith.constant 0 : i32
    %c0_i32_0 = arith.constant 0 : i32
    %c0_i32_1 = arith.constant 0 : i32
    return %c0_i32, %c0_i32_0 : i32, i32
  }
  func.func @transform_3(%arg0: i32) -> (i32, i32) {
    %c0_i32 = arith.constant 0 : i32
    %c0_i32_0 = arith.constant 0 : i32
    %c0_i32_1 = arith.constant 0 : i32
    return %c0_i32, %c0_i32_0 : i32, i32
  }
  func.func @transform_4(%arg0: i32) -> (i32, i32) {
    %c0_i32 = arith.constant 0 : i32
    %c0_i32_0 = arith.constant 0 : i32
    %c0_i32_1 = arith.constant 0 : i32
    return %c0_i32, %c0_i32_0 : i32, i32
  }
  func.func @transform_5(%arg0: i32) -> (i32, i32) {
    %c0_i32 = arith.constant 0 : i32
    %c0_i32_0 = arith.constant 0 : i32
    return %arg0, %c0_i32 : i32, i32
  }
}

</mosaic_0001>

<llo_original>
// kernel: tpu_custom_call.1
$region0: #{tpu_custom_call.1}
  #allocation0 [shape = 'u32[]', space=smem, size = 0x4, offset = 0x4, fixed_abs, tag = 'smem constant byte address 0x4 - core index']
  #allocation1 [shape = 'u32[144,128]{1,0:T(1,128)}', space=vmem, size = 0x12000, scoped, tag = 'internal scratch']
  %s0 = inlined_call_operand.vmem [shape: f32[8,16], index: 0, kind: input, shape index: {}]
  %s1 = inlined_call_operand.vmem [shape: f32[16,32], index: 1, kind: input, shape index: {}]
  %s2 = inlined_call_operand.vmem [shape: f32[1,32], index: 2, kind: input, shape index: {}]
  %s3 = inlined_call_operand.vmem [shape: f32[32,4], index: 3, kind: input, shape index: {}]
  %s4 = inlined_call_operand.vmem [shape: f32[1,4], index: 4, kind: input, shape index: {}]
  %s5 = inlined_call_operand.vmem [shape: f32[8,4], index: 5, kind: output, shape index: {}]
  %s6 = sld [smem:[#allocation0]]
  $region30: #{tpu_custom_call.1} parent=0
    _
  %s8 = ssub.s32 1, %s6
  %s9 = scalar_select 0, %s8, %s6
  // Predicated region
  $region2: #{tpu_custom_call.1} parent=0 // pred_check
    _
  $region3: #{tpu_custom_call.1} parent=0 // pred_check_branch
    %11 = sbr.rel (0) target = $region5
  $region4: #{tpu_custom_call.1} parent=0 // pred_region
    _
  $region5: #{tpu_custom_call.1} parent=0 // pred_fallthru
    _
  // Predicated region
  $region6: #{tpu_custom_call.1} parent=0 // pred_check
    _
  $region7: #{tpu_custom_call.1} parent=0 // pred_check_branch
    %13 = sbr.rel (0) target = $region9
  $region8: #{tpu_custom_call.1} parent=0 // pred_region
    _
  $region9: #{tpu_custom_call.1} parent=0 // pred_fallthru
    _
  // Predicated region
  $region10: #{tpu_custom_call.1} parent=0 // pred_check
    _
  $region11: #{tpu_custom_call.1} parent=0 // pred_check_branch
    %15 = sbr.rel (0) target = $region13
  $region12: #{tpu_custom_call.1} parent=0 // pred_region
    _
  $region13: #{tpu_custom_call.1} parent=0 // pred_fallthru
    _
  // Predicated region
  $region14: #{tpu_custom_call.1} parent=0 // pred_check
    _
  $region15: #{tpu_custom_call.1} parent=0 // pred_check_branch
    %17 = sbr.rel (0) target = $region17
  $region16: #{tpu_custom_call.1} parent=0 // pred_region
    _
  $region17: #{tpu_custom_call.1} parent=0 // pred_fallthru
    _
  // Predicated region
  $region18: #{tpu_custom_call.1} parent=0 // pred_check
    _
  $region19: #{tpu_custom_call.1} parent=0 // pred_check_branch
    %19 = sbr.rel (0) target = $region21
  $region20: #{tpu_custom_call.1} parent=0 // pred_region
    _
  $region21: #{tpu_custom_call.1} parent=0 // pred_fallthru
    _
  %v20 = vld [vmem:[%s2] sm:$0x1]
  %v21 = vld [vmem:[%s4] sm:$0x1]
  %v22 = vld [vmem:[%s0] sm:$0xff]
  %v23 = vld [vmem:[%s1] sm:$0xff]
  %v24 = vld [vmem:[%s1 + $0x8] sm:$0xff]
  %v26 = vlaneseq
  %v27 = vshrl.u32 %v26, 7
  %v28 = vsub.s32 0, %v27
  %v29 = vrot.slane %v20, %v28
  %vm31 = vcmask 130048
  %v33 = vsel %vm31, %v22, 0
  %35 = vmatprep.subr.mxu0 0.0
  %36 = vmatpush1.msra.mxu0 %v23
  %37 = vmatprep.subr.mxu0 0.0
  %38 = vmatpush1.msra.mxu0 %v24
  %39 = vmatprep.subr.mxu0 0.0
  %40 = vmatpush1.msra.mxu0 0.0
  %41 = vmatprep.subr.mxu0 0.0
  %42 = vmatpush1.msra.mxu0 0.0
  %43 = vmatprep.subr.mxu0 0.0
  %44 = vmatpush1.msra.mxu0 0.0
  %45 = vmatprep.subr.mxu0 0.0
  %46 = vmatpush1.msra.mxu0 0.0
  %47 = vmatprep.subr.mxu0 0.0
  %48 = vmatpush1.msra.mxu0 0.0
  %49 = vmatprep.subr.mxu0 0.0
  %50 = vmatpush1.msra.mxu0 0.0
  %51 = vmatprep.subr.mxu0 0.0
  %52 = vmatpush1.msra.mxu0 0.0
  %53 = vmatprep.subr.mxu0 0.0
  %54 = vmatpush1.msra.mxu0 0.0
  %55 = vmatprep.subr.mxu0 0.0
  %56 = vmatpush1.msra.mxu0 0.0
  %57 = vmatprep.subr.mxu0 0.0
  %58 = vmatpush1.msra.mxu0 0.0
  %59 = vmatprep.subr.mxu0 0.0
  %60 = vmatpush1.msra.mxu0 0.0
  %61 = vmatprep.subr.mxu0 0.0
  %62 = vmatpush1.msra.mxu0 0.0
  %63 = vmatprep.subr.mxu0 0.0
  %64 = vmatpush1.msra.mxu0 0.0
  %65 = vmatprep.subr.mxu0 0.0
  %66 = vmatpush1.msra.mxu0 0.0
  %67 = vmatprep.subr.mxu0 0.0
  %68 = vmatpush1.msra.mxu0 0.0
  %69 = vmatprep.subr.mxu0 0.0
  %70 = vmatpush1.msra.mxu0 0.0
  %71 = vmatprep.subr.mxu0 0.0
  %72 = vmatpush1.msra.mxu0 0.0
  %73 = vmatprep.subr.mxu0 0.0
  %74 = vmatpush1.msra.mxu0 0.0
  %75 = vmatprep.subr.mxu0 0.0
  %76 = vmatpush1.msra.mxu0 0.0
  %77 = vmatprep.subr.mxu0 0.0
  %78 = vmatpush1.msra.mxu0 0.0
  %79 = vmatprep.subr.mxu0 0.0
  %80 = vmatpush1.msra.mxu0 0.0
  %81 = vmatprep.subr.mxu0 0.0
  %82 = vmatpush1.msra.mxu0 0.0
  %83 = vmatprep.subr.mxu0 0.0
  %84 = vmatpush1.msra.mxu0 0.0
  %85 = vmatprep.subr.mxu0 0.0
  %86 = vmatpush1.msra.mxu0 0.0
  %87 = vmatprep.subr.mxu0 0.0
  %88 = vmatpush1.msra.mxu0 0.0
  %89 = vmatprep.subr.mxu0 0.0
  %90 = vmatpush1.msra.mxu0 0.0
  %91 = vmatprep.subr.mxu0 0.0
  %92 = vmatpush1.msra.mxu0 0.0
  %93 = vmatprep.subr.mxu0 0.0
  %94 = vmatpush1.msra.mxu0 0.0
  %95 = vmatprep.subr.mxu0 0.0
  %96 = vmatpush1.msra.mxu0 0.0
  %97 = vmatprep.subr.mxu0 0.0
  %98 = vmatpush1.msra.mxu0 0.0
  %99 = vmatprep.mubr.f32.mxu0 0.0
  %100 = vmatmul.mubr.f32.gmra.mrb[0].mxu0 %v33
  %v101 = vpop.f32.mrb[0].mxu0
  %v102 = vadd.f32 %v29, %v101
  %v103 = vpop.f32.mrb[0].mxu0
  %104 = vdwg.mxu0
  %v105 = vmax.f32 %v102, 0.0
  %v106 = vld [vmem:[%s3] sm:$0xff]
  %v107 = vld [vmem:[%s3 + $0x8] sm:$0xff]
  %v108 = vld [vmem:[%s3 + $0x10] sm:$0xff]
  %v109 = vld [vmem:[%s3 + $0x18] sm:$0xff]
  %v111 = vlaneseq
  %v112 = vshrl.u32 %v111, 7
  %v113 = vsub.s32 0, %v112
  %v114 = vrot.slane %v21, %v113
  %vm116 = vcmask 261120
  %v118 = vsel %vm116, %v105, 0
  %120 = vmatprep.subr.mxu0 0.0
  %121 = vmatpush1.msra.mxu0 %v106
  %122 = vmatprep.subr.mxu0 0.0
  %123 = vmatpush1.msra.mxu0 %v107
  %124 = vmatprep.subr.mxu0 0.0
  %125 = vmatpush1.msra.mxu0 %v108
  %126 = vmatprep.subr.mxu0 0.0
  %127 = vmatpush1.msra.mxu0 %v109
  %128 = vmatprep.subr.mxu0 0.0
  %129 = vmatpush1.msra.mxu0 0.0
  %130 = vmatprep.subr.mxu0 0.0
  %131 = vmatpush1.msra.mxu0 0.0
  %132 = vmatprep.subr.mxu0 0.0
  %133 = vmatpush1.msra.mxu0 0.0
  %134 = vmatprep.subr.mxu0 0.0
  %135 = vmatpush1.msra.mxu0 0.0
  %136 = vmatprep.subr.mxu0 0.0
  %137 = vmatpush1.msra.mxu0 0.0
  %138 = vmatprep.subr.mxu0 0.0
  %139 = vmatpush1.msra.mxu0 0.0
  %140 = vmatprep.subr.mxu0 0.0
  %141 = vmatpush1.msra.mxu0 0.0
  %142 = vmatprep.subr.mxu0 0.0
  %143 = vmatpush1.msra.mxu0 0.0
  %144 = vmatprep.subr.mxu0 0.0
  %145 = vmatpush1.msra.mxu0 0.0
  %146 = vmatprep.subr.mxu0 0.0
  %147 = vmatpush1.msra.mxu0 0.0
  %148 = vmatprep.subr.mxu0 0.0
  %149 = vmatpush1.msra.mxu0 0.0
  %150 = vmatprep.subr.mxu0 0.0
  %151 = vmatpush1.msra.mxu0 0.0
  %152 = vmatprep.subr.mxu0 0.0
  %153 = vmatpush1.msra.mxu0 0.0
  %154 = vmatprep.subr.mxu0 0.0
  %155 = vmatpush1.msra.mxu0 0.0
  %156 = vmatprep.subr.mxu0 0.0
  %157 = vmatpush1.msra.mxu0 0.0
  %158 = vmatprep.subr.mxu0 0.0
  %159 = vmatpush1.msra.mxu0 0.0
  %160 = vmatprep.subr.mxu0 0.0
  %161 = vmatpush1.msra.mxu0 0.0
  %162 = vmatprep.subr.mxu0 0.0
  %163 = vmatpush1.msra.mxu0 0.0
  %164 = vmatprep.subr.mxu0 0.0
  %165 = vmatpush1.msra.mxu0 0.0
  %166 = vmatprep.subr.mxu0 0.0
  %167 = vmatpush1.msra.mxu0 0.0
  %168 = vmatprep.subr.mxu0 0.0
  %169 = vmatpush1.msra.mxu0 0.0
  %170 = vmatprep.subr.mxu0 0.0
  %171 = vmatpush1.msra.mxu0 0.0
  %172 = vmatprep.subr.mxu0 0.0
  %173 = vmatpush1.msra.mxu0 0.0
  %174 = vmatprep.subr.mxu0 0.0
  %175 = vmatpush1.msra.mxu0 0.0
  %176 = vmatprep.subr.mxu0 0.0
  %177 = vmatpush1.msra.mxu0 0.0
  %178 = vmatprep.subr.mxu0 0.0
  %179 = vmatpush1.msra.mxu0 0.0
  %180 = vmatprep.subr.mxu0 0.0
  %181 = vmatpush1.msra.mxu0 0.0
  %182 = vmatprep.subr.mxu0 0.0
  %183 = vmatpush1.msra.mxu0 0.0
  %184 = vmatprep.mubr.f32.mxu0 0.0
  %185 = vmatmul.mubr.f32.gmra.mrb[0].mxu0 %v118
  %v186 = vpop.f32.mrb[0].mxu0
  %v187 = vadd.f32 %v114, %v186
  %v188 = vpop.f32.mrb[0].mxu0
  %189 = vdwg.mxu0
  %vm190 = vcmask 31744
  %191 = vst.msk [vmem:[%s5] sm:$0xff] %vm190, %v187
  // Predicated region
  $region22: #{tpu_custom_call.1} parent=0 // pred_check
    _
  $region23: #{tpu_custom_call.1} parent=0 // pred_check_branch
    %193 = sbr.rel (0) target = $region25
  $region24: #{tpu_custom_call.1} parent=0 // pred_region
    _
  $region25: #{tpu_custom_call.1} parent=0 // pred_fallthru
    _
  // Predicated region
  $region26: #{tpu_custom_call.1} parent=0 // pred_check
    _
  $region27: #{tpu_custom_call.1} parent=0 // pred_check_branch
    %195 = sbr.rel (0) target = $region29
  $region28: #{tpu_custom_call.1} parent=0 // pred_region
    _
  $region29: #{tpu_custom_call.1} parent=0 // pred_fallthru
    _

</llo_original>
